<compile_context>
chip_gen: v5e
topology: v5e:2x2
jax: 0.10.0
libtpu: 0.0.40
codegen_flags: <defaults>
</compile_context>

<pallas_src>
import jax
import jax.numpy as jnp
from jax.experimental import pallas as pl
from jax.experimental.pallas import tpu as pltpu

LANE = 128
MAX_TB = 65536   # keeps the real VMEM footprint (~320*tb B) under 32 MiB


def mlp_kernel(x_ref, w1_ref, w2_ref, b2_ref, w3c_ref, b3_ref, o_ref):
    # x_ref: (D+1, TB) bf16 -- features (+ constant-1 bias row) on sublanes,
    # batch on lanes.  Up-cast once; both dots accumulate in f32 on the MXU.
    x = x_ref[...].astype(jnp.float32)

    # linear1 + ReLU (MXU): (H1, D+1) @ (D+1, TB) -> (H1, TB).
    # b1 is folded into the last column of w1 (bias augmentation).
    h1 = jnp.dot(w1_ref[...], x, preferred_element_type=jnp.float32)
    h1 = jnp.maximum(h1, 0.0)

    # linear2 + ReLU (MXU): (H2, H1) @ (H1, TB) -> (H2, TB)
    h2 = jnp.dot(w2_ref[...], h1, preferred_element_type=jnp.float32)
    h2 = jnp.maximum(h2 + b2_ref[...], 0.0)

    # linear3 + ReLU: a [.,16]x[16,1] matmul would waste an MXU push; do it as
    # a VPU multiply + sublane reduce (XLU) instead.  w3c_ref is (H2, 1).
    h3 = jnp.sum(h2 * w3c_ref[...], axis=0, keepdims=True) + b3_ref[...]  # (1, TB)
    o_ref[...] = jnp.maximum(h3, 0.0).astype(o_ref.dtype)


def neural_network_forward(x, w1, b1, w2, b2, w3, b3, *,
                           tb=32768, x_dtype=jnp.bfloat16):
    """Fused MLP forward.

    x : [B, D] float32 (PyTorch layout)
    w1: [H1, D], b1: [H1]      (native nn.Linear layouts)
    w2: [H2, H1], b2: [H2]
    w3: [1, H2],  b3: [1]
    Returns [B, 1] float32.
    """
    batch, d = x.shape
    h1 = w1.shape[0]
    h2 = w2.shape[0]

    # ---- lane-tile selection -------------------------------------------------
    padded = pl.cdiv(batch, LANE) * LANE
    tb = max(LANE, min(int(tb), MAX_TB))
    tb = (tb // LANE) * LANE
    tb = min(tb, padded)
    if padded >= 2 * LANE:
        # keep >= 2 grid steps so "parallel" can shard across v7x's 2 TCs
        tb = min(tb, (padded // 2 // LANE) * LANE)
    padded = pl.cdiv(padded, tb) * tb
    grid = (padded // tb,)

    # ---- input prep: feature-major, bias-1 row, batch pad, bf16 --------------
    # TODO(synk): ideally the producer emits x already as a feature-major bf16
    # [D+1, B] slab so this transpose/pad/cast pass over x disappears entirely.
    xt = jnp.concatenate([x.T, jnp.ones((1, batch), x.dtype)], axis=0)  # (D+1, B)
    xt = jnp.pad(xt, ((0, 0), (0, padded - batch))).astype(x_dtype)     # (D+1, padded)

    # ---- parameter prep: b1 folded into w1; biases / w3 as columns -----------
    w1a = jnp.concatenate([w1, b1.reshape(h1, 1)], axis=1)   # (H1, D+1)
    b2c = b2.reshape(h2, 1)
    w3c = w3.reshape(h2, 1)
    b3c = b3.reshape(1, 1)

    param_bytes = 4 * (h1 * (d + 1) + h2 * h1 + h2 + h2 + 1)
    x_bytes = jnp.dtype(x_dtype).itemsize * padded * (d + 1)

    out = pl.pallas_call(
        mlp_kernel,
        out_shape=jax.ShapeDtypeStruct((1, padded), jnp.float32),
        grid=grid,
        in_specs=[
            pl.BlockSpec((d + 1, tb), lambda i: (0, i)),     # x tile (lane-dense)
            pl.BlockSpec((h1, d + 1), lambda i: (0, 0)),     # w1|b1 (VMEM-resident)
            pl.BlockSpec((h2, h1), lambda i: (0, 0)),        # w2
            pl.BlockSpec((h2, 1), lambda i: (0, 0)),         # b2
            pl.BlockSpec((h2, 1), lambda i: (0, 0)),         # w3 column
            pl.BlockSpec((1, 1), lambda i: (0, 0)),          # b3
        ],
        out_specs=pl.BlockSpec((1, tb), lambda i: (0, i)),
        compiler_params=pltpu.CompilerParams(
            dimension_semantics=("parallel",)),              # 2 TCs on v7x
        cost_estimate=pl.CostEstimate(
            flops=2 * padded * ((d + 1) * h1 + h1 * h2 + h2),
            transcendentals=0,
            bytes_accessed=x_bytes + 4 * padded + param_bytes),
    )(xt, w1a, w2, b2c, w3c, b3c)

    return out[:, :batch].T                                  # -> [B, 1]


def init_params(key, input_dim, n1, n2):
    """Deterministic PyTorch nn.Linear-style init, native [out, in] layouts."""
    ks = jax.random.split(key, 6)

    def lin(kw, kb, fan_in, fan_out):
        bound = 1.0 / jnp.sqrt(jnp.float32(fan_in))
        w = jax.random.uniform(kw, (fan_out, fan_in), jnp.float32, -bound, bound)
        b = jax.random.uniform(kb, (fan_out,), jnp.float32, -bound, bound)
        return w, b

    w1, b1 = lin(ks[0], ks[1], input_dim, n1)
    w2, b2 = lin(ks[2], ks[3], n1, n2)
    w3, b3 = lin(ks[4], ks[5], n2, 1)
    return w1, b1, w2, b2, w3, b3


if __name__ == "__main__":
    # Titanic MLP shapes: 8 features, hidden 32 / 16, scalar output.
    # batch=256 exercises the batch grid (tb clamps to 128 -> 2 grid steps,
    # so the v7x dual-TC path is covered) while staying small.
    batch, input_dim, n1, n2 = 256, 8, 32, 16

    key = jax.random.PRNGKey(0)
    kx, kp = jax.random.split(key)
    x = jax.random.normal(kx, (batch, input_dim), jnp.float32)
    w1, b1, w2, b2, w3, b3 = init_params(kp, input_dim, n1, n2)

    out = neural_network_forward(x, w1, b1, w2, b2, w3, b3)
    out = jax.block_until_ready(out)

    # Pure-JAX reference (PyTorch semantics: x @ W^T + b, ReLU everywhere —
    # the module's `sigmoid` attribute is literally nn.ReLU()).  The reference
    # uses the same bf16-quantized input the kernel consumes, so the only
    # remaining deltas are matmul accumulation-order effects.
    xq = x.astype(jnp.bfloat16).astype(jnp.float32)
    ref = jnp.maximum(xq @ w1.T + b1, 0.0)
    ref = jnp.maximum(ref @ w2.T + b2, 0.0)
    ref = jnp.maximum(ref @ w3.T + b3, 0.0)

    assert out.shape == (batch, 1)
    assert jnp.allclose(out, ref, atol=1e-3, rtol=1e-3)

    print("KERNEL_OK")
</pallas_src>

<mosaic_0001>
module attributes {stable_mosaic.version = 11 : i64} {
  func.func @mlp_kernel(%arg0: i32, %arg1: memref<9x128xbf16, #tpu.memory_space<vmem>>, %arg2: memref<32x9xf32, #tpu.memory_space<vmem>>, %arg3: memref<16x32xf32, #tpu.memory_space<vmem>>, %arg4: memref<16x1xf32, #tpu.memory_space<vmem>>, %arg5: memref<16x1xf32, #tpu.memory_space<vmem>>, %arg6: memref<1x1xf32, #tpu.memory_space<vmem>>, %arg7: memref<1x128xf32, #tpu.memory_space<vmem>>) attributes {dimension_semantics = [#tpu.dimension_semantics<parallel>], iteration_bounds = array<i64: 2>, scalar_prefetch = 0 : i64, scratch_operands = 0 : i64, tpu.core_type = #tpu.core_type<tc>, window_params = [{transform_indices = @transform_0, window_bounds = array<i64: 9, 128>}, {pipeline_mode = #tpu.pipeline_mode<synchronous>, transform_indices = @transform_1, window_bounds = array<i64: 32, 9>}, {pipeline_mode = #tpu.pipeline_mode<synchronous>, transform_indices = @transform_2, window_bounds = array<i64: 16, 32>}, {pipeline_mode = #tpu.pipeline_mode<synchronous>, transform_indices = @transform_3, window_bounds = array<i64: 16, 1>}, {pipeline_mode = #tpu.pipeline_mode<synchronous>, transform_indices = @transform_4, window_bounds = array<i64: 16, 1>}, {pipeline_mode = #tpu.pipeline_mode<synchronous>, transform_indices = @transform_5, window_bounds = array<i64: 1, 1>}, {transform_indices = @transform_6, window_bounds = array<i64: 1, 128>}]} {
    %c0 = arith.constant 0 : index
    %c0_0 = arith.constant 0 : index
    %0 = vector.load %arg1[%c0, %c0_0] : memref<9x128xbf16, #tpu.memory_space<vmem>>, vector<9x128xbf16>
    %1 = arith.extf %0 : vector<9x128xbf16> to vector<9x128xf32>
    %c0_1 = arith.constant 0 : index
    %c0_2 = arith.constant 0 : index
    %2 = vector.load %arg2[%c0_1, %c0_2] : memref<32x9xf32, #tpu.memory_space<vmem>>, vector<32x9xf32>
    %cst = arith.constant dense<0.000000e+00> : vector<32x128xf32>
    %3 = tpu.matmul %2, %1, %cst {dimension_numbers = #tpu.dot_dimension_numbers<[1], [0], [0], [1], [0, 0, 1, 1], [], []>} : vector<32x9xf32>, vector<9x128xf32>, vector<32x128xf32> -> vector<32x128xf32>
    %cst_3 = arith.constant 0.000000e+00 : f32
    %4 = vector.broadcast %cst_3 : f32 to vector<32x128xf32>
    %5 = arith.maximumf %3, %4 : vector<32x128xf32>
    %c0_4 = arith.constant 0 : index
    %c0_5 = arith.constant 0 : index
    %6 = vector.load %arg3[%c0_4, %c0_5] : memref<16x32xf32, #tpu.memory_space<vmem>>, vector<16x32xf32>
    %cst_6 = arith.constant dense<0.000000e+00> : vector<16x128xf32>
    %7 = tpu.matmul %6, %5, %cst_6 {dimension_numbers = #tpu.dot_dimension_numbers<[1], [0], [0], [1], [0, 0, 1, 1], [], []>} : vector<16x32xf32>, vector<32x128xf32>, vector<16x128xf32> -> vector<16x128xf32>
    %c0_7 = arith.constant 0 : index
    %c0_8 = arith.constant 0 : index
    %8 = vector.load %arg4[%c0_7, %c0_8] : memref<16x1xf32, #tpu.memory_space<vmem>>, vector<16x1xf32>
    %9 = vector.broadcast %8 : vector<16x1xf32> to vector<16x128xf32>
    %10 = arith.addf %7, %9 : vector<16x128xf32>
    %cst_9 = arith.constant 0.000000e+00 : f32
    %11 = vector.broadcast %cst_9 : f32 to vector<16x128xf32>
    %12 = arith.maximumf %10, %11 : vector<16x128xf32>
    %c0_10 = arith.constant 0 : index
    %c0_11 = arith.constant 0 : index
    %13 = vector.load %arg5[%c0_10, %c0_11] : memref<16x1xf32, #tpu.memory_space<vmem>>, vector<16x1xf32>
    %14 = vector.broadcast %13 : vector<16x1xf32> to vector<16x128xf32>
    %15 = arith.mulf %12, %14 : vector<16x128xf32>
    %cst_12 = arith.constant dense<0.000000e+00> : vector<128xf32>
    %16 = vector.multi_reduction <add>, %15, %cst_12 [0] : vector<16x128xf32> to vector<128xf32>
    %17 = vector.shape_cast %16 : vector<128xf32> to vector<1x128xf32>
    %c0_13 = arith.constant 0 : index
    %c0_14 = arith.constant 0 : index
    %18 = vector.load %arg6[%c0_13, %c0_14] : memref<1x1xf32, #tpu.memory_space<vmem>>, vector<1x1xf32>
    %19 = vector.broadcast %18 : vector<1x1xf32> to vector<1x128xf32>
    %20 = arith.addf %17, %19 : vector<1x128xf32>
    %cst_15 = arith.constant 0.000000e+00 : f32
    %21 = vector.broadcast %cst_15 : f32 to vector<1x128xf32>
    %22 = arith.maximumf %20, %21 : vector<1x128xf32>
    %c0_16 = arith.constant 0 : index
    %c0_17 = arith.constant 0 : index
    %23 = vector.load %arg7[%c0_16, %c0_17] : memref<1x128xf32, #tpu.memory_space<vmem>>, vector<1x128xf32>
    tpu.vector_store %arg7[%c0_16, %c0_17], %22 {strides = array<i32>} : memref<1x128xf32, #tpu.memory_space<vmem>>, vector<1x128xf32>,
    return
  }
  func.func @transform_0(%arg0: i32) -> (i32, i32) {
    %c0_i32 = arith.constant 0 : i32
    %c0_i32_0 = arith.constant 0 : i32
    return %c0_i32, %arg0 : i32, i32
  }
  func.func @transform_1(%arg0: i32) -> (i32, i32) {
    %c0_i32 = arith.constant 0 : i32
    %c0_i32_0 = arith.constant 0 : i32
    %c0_i32_1 = arith.constant 0 : i32
    return %c0_i32, %c0_i32_0 : i32, i32
  }
  func.func @transform_2(%arg0: i32) -> (i32, i32) {
    %c0_i32 = arith.constant 0 : i32
    %c0_i32_0 = arith.constant 0 : i32
    %c0_i32_1 = arith.constant 0 : i32
    return %c0_i32, %c0_i32_0 : i32, i32
  }
  func.func @transform_3(%arg0: i32) -> (i32, i32) {
    %c0_i32 = arith.constant 0 : i32
    %c0_i32_0 = arith.constant 0 : i32
    %c0_i32_1 = arith.constant 0 : i32
    return %c0_i32, %c0_i32_0 : i32, i32
  }
  func.func @transform_4(%arg0: i32) -> (i32, i32) {
    %c0_i32 = arith.constant 0 : i32
    %c0_i32_0 = arith.constant 0 : i32
    %c0_i32_1 = arith.constant 0 : i32
    return %c0_i32, %c0_i32_0 : i32, i32
  }
  func.func @transform_5(%arg0: i32) -> (i32, i32) {
    %c0_i32 = arith.constant 0 : i32
    %c0_i32_0 = arith.constant 0 : i32
    %c0_i32_1 = arith.constant 0 : i32
    return %c0_i32, %c0_i32_0 : i32, i32
  }
  func.func @transform_6(%arg0: i32) -> (i32, i32) {
    %c0_i32 = arith.constant 0 : i32
    %c0_i32_0 = arith.constant 0 : i32
    return %c0_i32, %arg0 : i32, i32
  }
}

</mosaic_0001>

<llo_original>
// kernel: tpu_custom_call.1
$region0: #{tpu_custom_call.1}
  #allocation0 [shape = 'u32[]', space=smem, size = 0x4, offset = 0x4, fixed_abs, tag = 'smem constant byte address 0x4 - core index']
  #allocation1 [shape = 'u32[72,128]{1,0:T(1,128)}', space=vmem, size = 0x9000, scoped, tag = 'internal scratch']
  #allocation2 [shape = 'f32[1,1]{1,0:T(1,128)S(1)}', space=vmem, size = 0x200, scoped, tag = 'scoped memory for tpu_custom_call.1']
  %s0 = inlined_call_operand.vmem [shape: bf16[9,256], index: 0, kind: input, shape index: {}]
  %s1 = inlined_call_operand.vmem [shape: f32[32,9], index: 1, kind: input, shape index: {}]
  %s2 = inlined_call_operand.vmem [shape: f32[16,32], index: 2, kind: input, shape index: {}]
  %s3 = inlined_call_operand.vmem [shape: f32[16,1], index: 3, kind: input, shape index: {}]
  %s4 = inlined_call_operand.vmem [shape: f32[16,1], index: 4, kind: input, shape index: {}]
  %s5 = inlined_call_operand.<no memory space> [shape: f32[1,1], index: 5, kind: input, shape index: {}]
  %s6 = inlined_call_operand.hbm [shape: f32[1,256], index: 6, kind: output, shape index: {}]
  %s7 = sld [smem:[#allocation0]]
  $region98: #{tpu_custom_call.1} parent=0
    _
  %s9 = ssub.s32 1, %s7
  %s10 = scalar_select 0, %s9, %s7
  %v11 = vstv %s5
  %12 = vst [vmem:[#allocation2] sm:$0x1] %v11
  $region1: #{tpu_custom_call.1} parent=0
    #allocation3 [shape = 'u8[8192]{0}', space=vmem, size = 0x2000, scoped, tag = 'input window, operand 0']
    #allocation4 [shape = 'u8[1024]{0}', space=vmem, size = 0x400, scoped, tag = 'output window, operand 0']
    #allocation5 [shape = 's32[2]{0}', space=sflag, size = 0x8, scoped, tag = 'scoped memory for tpu_custom_call.1']
    %13 = vsyncpa [#allocation5], 0
    %s14 = scalar_lea.sflag [#allocation5], 1
    %15 = vsyncpa %s14, 0
    loop: start=0, step=1, limit=4
    $region2: #{tpu_custom_call.1} parent=1 // loop_pre_header
      _
    $region3: #{tpu_custom_call.1} parent=1 // loop_header
      %s17 = sphi 0, %s21
      %p18 = scmp.ge.s32.totalorder %s17, 4
      %s27 = sphi 0, %s29
      %s30 = sphi 0, %s27
      %s31 = sphi 0, %s30
      %s47 = sphi 0, %s31
      %s51 = sphi 0, %s51
      %s53 = sphi 0, %s51
      %s54 = sphi 0, %s53
      %s68 = sphi 0, %s54
      %s72 = sphi 0, %s72
      %s74 = sphi 0, %s72
      %s75 = sphi 0, %s74
      %s89 = sphi 0, %s75
      %s93 = sphi 0, %s93
      %s95 = sphi 0, %s93
      %s96 = sphi 0, %s95
      %s110 = sphi 0, %s96
      %s114 = sphi 0, %s114
      %s116 = sphi 0, %s114
      %s117 = sphi 0, %s116
      %s131 = sphi 0, %s117
      %s135 = sphi 0, %s135
      %s137 = sphi 0, %s135
      %s138 = sphi 0, %s137
      %s152 = sphi 0, %s138
      %s158 = sphi 0, %s160
      %s161 = sphi 0, %s158
      %s162 = sphi 0, %s161
      %s178 = sphi 0, %s162
    $region4: #{tpu_custom_call.1} parent=1 // loop_header_branch
      %20 = sbr.rel (%p18) target = $region8
    $region5: #{tpu_custom_call.1} parent=1 // loop_body
      %s22 = ssub.s32 %s17, 1
      %s23 = ssub.s32 %s17, 2
      %s24 = sadd.s32 %s17, 1
      %s25 = ssub.s32 %s17, %s24
      %p26 = scmp.eq.s32.totalorder %s25, 0
      %s28 = sadd.s32 %s27, 1
      %s29 = scalar_select %p26, %s27, %s28
      %p32 = pneg %p26
      %p33 = scmp.eq.s32.totalorder %s17, 1
      %p34 = por %p32, %p33
      %p35 = scmp.ne.s32.totalorder %s27, %s30
      %p36 = scmp.eq.s32.totalorder %s17, 0
      %p37 = por %p35, %p36
      %p38 = scmp.ne.s32.totalorder %s27, %s30
      %p39 = scmp.eq.s32.totalorder %s22, 1
      %p40 = por %p38, %p39
      %p41 = scmp.ne.s32.totalorder %s30, %s31
      %p42 = scmp.eq.s32.totalorder %s22, 0
      %p43 = por %p41, %p42
      %p44 = scmp.ne.s32.totalorder %s30, %s31
      %p45 = scmp.eq.s32.totalorder %s23, 1
      %p46 = por %p44, %p45
      %p48 = scmp.ne.s32.totalorder %s31, %s47
      %p49 = scmp.eq.s32.totalorder %s23, 0
      %p50 = por %p48, %p49
      %s52 = sadd.s32 %s51, 1
      %p55 = scmp.eq.s32.totalorder %s17, 1
      %p56 = scmp.ne.s32.totalorder %s51, %s53
      %p57 = scmp.eq.s32.totalorder %s17, 0
      %p58 = por %p56, %p57
      %p59 = scmp.ne.s32.totalorder %s51, %s53
      %p60 = scmp.eq.s32.totalorder %s22, 1
      %p61 = por %p59, %p60
      %p62 = scmp.ne.s32.totalorder %s53, %s54
      %p63 = scmp.eq.s32.totalorder %s22, 0
      %p64 = por %p62, %p63
      %p65 = scmp.ne.s32.totalorder %s53, %s54
      %p66 = scmp.eq.s32.totalorder %s23, 1
      %p67 = por %p65, %p66
      %p69 = scmp.ne.s32.totalorder %s54, %s68
      %p70 = scmp.eq.s32.totalorder %s23, 0
      %p71 = por %p69, %p70
      %s73 = sadd.s32 %s72, 1
      %p76 = scmp.eq.s32.totalorder %s17, 1
      %p77 = scmp.ne.s32.totalorder %s72, %s74
      %p78 = scmp.eq.s32.totalorder %s17, 0
      %p79 = por %p77, %p78
      %p80 = scmp.ne.s32.totalorder %s72, %s74
      %p81 = scmp.eq.s32.totalorder %s22, 1
      %p82 = por %p80, %p81
      %p83 = scmp.ne.s32.totalorder %s74, %s75
      %p84 = scmp.eq.s32.totalorder %s22, 0
      %p85 = por %p83, %p84
      %p86 = scmp.ne.s32.totalorder %s74, %s75
      %p87 = scmp.eq.s32.totalorder %s23, 1
      %p88 = por %p86, %p87
      %p90 = scmp.ne.s32.totalorder %s75, %s89
      %p91 = scmp.eq.s32.totalorder %s23, 0
      %p92 = por %p90, %p91
      %s94 = sadd.s32 %s93, 1
      %p97 = scmp.eq.s32.totalorder %s17, 1
      %p98 = scmp.ne.s32.totalorder %s93, %s95
      %p99 = scmp.eq.s32.totalorder %s17, 0
      %p100 = por %p98, %p99
      %p101 = scmp.ne.s32.totalorder %s93, %s95
      %p102 = scmp.eq.s32.totalorder %s22, 1
      %p103 = por %p101, %p102
      %p104 = scmp.ne.s32.totalorder %s95, %s96
      %p105 = scmp.eq.s32.totalorder %s22, 0
      %p106 = por %p104, %p105
      %p107 = scmp.ne.s32.totalorder %s95, %s96
      %p108 = scmp.eq.s32.totalorder %s23, 1
      %p109 = por %p107, %p108
      %p111 = scmp.ne.s32.totalorder %s96, %s110
      %p112 = scmp.eq.s32.totalorder %s23, 0
      %p113 = por %p111, %p112
      %s115 = sadd.s32 %s114, 1
      %p118 = scmp.eq.s32.totalorder %s17, 1
      %p119 = scmp.ne.s32.totalorder %s114, %s116
      %p120 = scmp.eq.s32.totalorder %s17, 0
      %p121 = por %p119, %p120
      %p122 = scmp.ne.s32.totalorder %s114, %s116
      %p123 = scmp.eq.s32.totalorder %s22, 1
      %p124 = por %p122, %p123
      %p125 = scmp.ne.s32.totalorder %s116, %s117
      %p126 = scmp.eq.s32.totalorder %s22, 0
      %p127 = por %p125, %p126
      %p128 = scmp.ne.s32.totalorder %s116, %s117
      %p129 = scmp.eq.s32.totalorder %s23, 1
      %p130 = por %p128, %p129
      %p132 = scmp.ne.s32.totalorder %s117, %s131
      %p133 = scmp.eq.s32.totalorder %s23, 0
      %p134 = por %p132, %p133
      %s136 = sadd.s32 %s135, 1
      %p139 = scmp.eq.s32.totalorder %s17, 1
      %p140 = scmp.ne.s32.totalorder %s135, %s137
      %p141 = scmp.eq.s32.totalorder %s17, 0
      %p142 = por %p140, %p141
      %p143 = scmp.ne.s32.totalorder %s135, %s137
      %p144 = scmp.eq.s32.totalorder %s22, 1
      %p145 = por %p143, %p144
      %p146 = scmp.ne.s32.totalorder %s137, %s138
      %p147 = scmp.eq.s32.totalorder %s22, 0
      %p148 = por %p146, %p147
      %p149 = scmp.ne.s32.totalorder %s137, %s138
      %p150 = scmp.eq.s32.totalorder %s23, 1
      %p151 = por %p149, %p150
      %p153 = scmp.ne.s32.totalorder %s138, %s152
      %p154 = scmp.eq.s32.totalorder %s23, 0
      %p155 = por %p153, %p154
      %s156 = ssub.s32 %s17, %s24
      %p157 = scmp.eq.s32.totalorder %s156, 0
      %s159 = sadd.s32 %s158, 1
      %s160 = scalar_select %p157, %s158, %s159
      %p163 = pneg %p157
      %p164 = scmp.eq.s32.totalorder %s17, 1
      %p165 = por %p163, %p164
      %p166 = scmp.ne.s32.totalorder %s158, %s161
      %p167 = scmp.eq.s32.totalorder %s17, 0
      %p168 = por %p166, %p167
      %p169 = scmp.ne.s32.totalorder %s158, %s161
      %p170 = scmp.eq.s32.totalorder %s22, 1
      %p171 = por %p169, %p170
      %p172 = scmp.ne.s32.totalorder %s161, %s162
      %p173 = scmp.eq.s32.totalorder %s22, 0
      %p174 = por %p172, %p173
      %p175 = scmp.ne.s32.totalorder %s161, %s162
      %p176 = scmp.eq.s32.totalorder %s23, 1
      %p177 = por %p175, %p176
      %p179 = scmp.ne.s32.totalorder %s162, %s178
      %p180 = scmp.eq.s32.totalorder %s23, 0
      %p181 = por %p179, %p180
      %p182 = scmp.le.s32.totalorder 1, %s17
      %p183 = scmp.lt.s32.totalorder %s17, 3
      %p184 = pnand %p182, %p183
      %p185 = pneg %p184
      // Predicated region
      $region9: #{tpu_custom_call.1} parent=5 // pred_check
        _
      $region10: #{tpu_custom_call.1} parent=5 // pred_check_branch
        %187 = sbr.rel (%p184) target = $region12
      $region11: #{tpu_custom_call.1} parent=5 // pred_region
        %s188 = ssub.s32 %s17, 1
        // Predicated region
        $region13: #{tpu_custom_call.1} parent=11 // pred_check
          %p189 = pneg %p64
        $region14: #{tpu_custom_call.1} parent=11 // pred_check_branch
          %191 = sbr.rel (%p189) target = $region16
        $region15: #{tpu_custom_call.1} parent=11 // pred_region
          _
        $region16: #{tpu_custom_call.1} parent=11 // pred_fallthru
          _
        // Predicated region
        $region17: #{tpu_custom_call.1} parent=11 // pred_check
          %p192 = pneg %p85
        $region18: #{tpu_custom_call.1} parent=11 // pred_check_branch
          %194 = sbr.rel (%p192) target = $region20
        $region19: #{tpu_custom_call.1} parent=11 // pred_region
          _
        $region20: #{tpu_custom_call.1} parent=11 // pred_fallthru
          _
        // Predicated region
        $region21: #{tpu_custom_call.1} parent=11 // pred_check
          %p195 = pneg %p106
        $region22: #{tpu_custom_call.1} parent=11 // pred_check_branch
          %197 = sbr.rel (%p195) target = $region24
        $region23: #{tpu_custom_call.1} parent=11 // pred_region
          _
        $region24: #{tpu_custom_call.1} parent=11 // pred_fallthru
          _
        // Predicated region
        $region25: #{tpu_custom_call.1} parent=11 // pred_check
          %p198 = pneg %p127
        $region26: #{tpu_custom_call.1} parent=11 // pred_check_branch
          %200 = sbr.rel (%p198) target = $region28
        $region27: #{tpu_custom_call.1} parent=11 // pred_region
          _
        $region28: #{tpu_custom_call.1} parent=11 // pred_fallthru
          _
        // Predicated region
        $region29: #{tpu_custom_call.1} parent=11 // pred_check
          %p201 = pneg %p148
        $region30: #{tpu_custom_call.1} parent=11 // pred_check_branch
          %203 = sbr.rel (%p201) target = $region32
        $region31: #{tpu_custom_call.1} parent=11 // pred_region
          _
        $region32: #{tpu_custom_call.1} parent=11 // pred_fallthru
          _
      $region12: #{tpu_custom_call.1} parent=5 // pred_fallthru
        _
      %p204 = scmp.lt.s32.totalorder %s17, 2
      // Predicated region
      $region33: #{tpu_custom_call.1} parent=5 // pred_check
        %p205 = pneg %p204
      $region34: #{tpu_custom_call.1} parent=5 // pred_check_branch
        %207 = sbr.rel (%p205) target = $region36
      $region35: #{tpu_custom_call.1} parent=5 // pred_region
        // Predicated region
        $region37: #{tpu_custom_call.1} parent=35 // pred_check
          %p208 = pneg %p37
        $region38: #{tpu_custom_call.1} parent=35 // pred_check_branch
          %210 = sbr.rel (%p208) target = $region40
        $region39: #{tpu_custom_call.1} parent=35 // pred_region
          %s211 = sand.u32 %s27, 1
          %s212 = sand.u32 %s27, 1
          %s213 = smul.addr %s212, 8
          %s214 = scalar_lea.vmem [#allocation3], %s213
          %s215 = smul.addr %s17, 4
          %s216 = scalar_lea.vmem %s0, %s215
          // Predicated region
          $region41: #{tpu_custom_call.1} parent=39 // pred_check
            _
          $region42: #{tpu_custom_call.1} parent=39 // pred_check_branch
            %218 = sbr.rel (0) target = $region44
          $region43: #{tpu_custom_call.1} parent=39 // pred_region
            // Predicated region
            $region45: #{tpu_custom_call.1} parent=43 // pred_check
              _
            $region46: #{tpu_custom_call.1} parent=43 // pred_check_branch
              %220 = sbr.rel target = $region48
            $region47: #{tpu_custom_call.1} parent=43 // pred_region
              // Predicated region
              $region60: #{tpu_custom_call.1} parent=47 // pred_check
                _
              $region61: #{tpu_custom_call.1} parent=47 // pred_check_branch
                %238 = sbr.rel (0) target = $region63
              $region62: #{tpu_custom_call.1} parent=47 // pred_region
                loop: start=0, step=1, limit=1
                $region64: #{tpu_custom_call.1} parent=62 // loop_pre_header
                  _
                $region65: #{tpu_custom_call.1} parent=62 // loop_header
                  %s240 = sphi 0, %s244
                  %p241 = scmp.ge.s32.totalorder %s240, 1
                  %s245 = sphi %s216, %s216
                  %s246 = sphi %s214, %s214
                $region66: #{tpu_custom_call.1} parent=62 // loop_header_branch
                  %243 = sbr.rel (%p241) target = $region70
                $region67: #{tpu_custom_call.1} parent=62 // loop_body
                  _
                $region68: #{tpu_custom_call.1} parent=62 // loop_footer
                  %s244 = sadd.s32 1, %s240
                $region69: #{tpu_custom_call.1} parent=62 // loop_footer_branch
                  %239 = sbr.rel target = $region65
                $region70: #{tpu_custom_call.1} parent=62 // loop_exit
                  _
                %s248 = ssub.s32 16, 1
                loop: start=0, step=1, limit=1
                $region71: #{tpu_custom_call.1} parent=62 // loop_pre_header
                  _
                $region72: #{tpu_custom_call.1} parent=62 // loop_header
                  %s250 = sphi 0, %s254
                  %p251 = scmp.ge.s32.totalorder %s250, 1
                  %s255 = sphi %s216, %s216
                  %s256 = sphi %s214, %s214
                $region73: #{tpu_custom_call.1} parent=62 // loop_header_branch
                  %253 = sbr.rel (%p251) target = $region77
                $region74: #{tpu_custom_call.1} parent=62 // loop_body
                  %v257 = vld [vmem:[%s255] sm:%s248]
                  %258 = vst [vmem:[%s256] sm:%s248] %v257
                  %v259 = vld [vmem:[%s255 + $0x8] sm:%s248]
                  %260 = vst [vmem:[%s256 + $0x4] sm:%s248] %v259
                $region75: #{tpu_custom_call.1} parent=62 // loop_footer
                  %s254 = sadd.s32 1, %s250
                $region76: #{tpu_custom_call.1} parent=62 // loop_footer_branch
                  %249 = sbr.rel target = $region72
                $region77: #{tpu_custom_call.1} parent=62 // loop_exit
                  _
              $region63: #{tpu_custom_call.1} parent=47 // pred_fallthru
                _
            $region48: #{tpu_custom_call.1} parent=43 // pred_fallthru
              _
            // Predicated region
            $region49: #{tpu_custom_call.1} parent=43 // pred_check
              _
            $region50: #{tpu_custom_call.1} parent=43 // pred_check_branch
              %222 = sbr.rel (0) target = $region52
            $region51: #{tpu_custom_call.1} parent=43 // pred_region
              %s224 = ssub.s32 16, 1
              loop: start=0, step=1, limit=1
              $region53: #{tpu_custom_call.1} parent=51 // loop_pre_header
                _
              $region54: #{tpu_custom_call.1} parent=51 // loop_header
                %s226 = sphi 0, %s230
                %p227 = scmp.ge.s32.totalorder %s226, 1
                %s231 = sphi %s216, %s216
                %s232 = sphi %s214, %s214
              $region55: #{tpu_custom_call.1} parent=51 // loop_header_branch
                %229 = sbr.rel (%p227) target = $region59
              $region56: #{tpu_custom_call.1} parent=51 // loop_body
                %v233 = vld [vmem:[%s231] sm:%s224]
                %234 = vst [vmem:[%s232] sm:%s224] %v233
                %v235 = vld [vmem:[%s231 + $0x8] sm:%s224]
                %236 = vst [vmem:[%s232 + $0x4] sm:%s224] %v235
              $region57: #{tpu_custom_call.1} parent=51 // loop_footer
                %s230 = sadd.s32 1, %s226
              $region58: #{tpu_custom_call.1} parent=51 // loop_footer_branch
                %225 = sbr.rel target = $region54
              $region59: #{tpu_custom_call.1} parent=51 // loop_exit
                _
            $region52: #{tpu_custom_call.1} parent=43 // pred_fallthru
              _
          $region44: #{tpu_custom_call.1} parent=39 // pred_fallthru
            _
          %261 = vnop
        $region40: #{tpu_custom_call.1} parent=35 // pred_fallthru
          _
      $region36: #{tpu_custom_call.1} parent=5 // pred_fallthru
        _
      %p262 = scmp.le.s32.totalorder 1, %s17
      %p263 = scmp.lt.s32.totalorder %s17, 3
      %p264 = pnand %p262, %p263
      %p265 = pneg %p264
      // Predicated region
      $region78: #{tpu_custom_call.1} parent=5 // pred_check
        _
      $region79: #{tpu_custom_call.1} parent=5 // pred_check_branch
        %267 = sbr.rel (%p264) target = $region81
      $region80: #{tpu_custom_call.1} parent=5 // pred_region
        %s268 = ssub.s32 %s17, 1
        %s269 = sand.u32 %s30, 1
        %s270 = sand.u32 %s30, 1
        %s271 = smul.addr %s270, 8
        %s272 = scalar_lea.vmem [#allocation3], %s271
        // Predicated region
        $region82: #{tpu_custom_call.1} parent=80 // pred_check
          %p273 = pneg %p43
        $region83: #{tpu_custom_call.1} parent=80 // pred_check_branch
          %275 = sbr.rel (%p273) target = $region85
        $region84: #{tpu_custom_call.1} parent=80 // pred_region
          _
        $region85: #{tpu_custom_call.1} parent=80 // pred_fallthru
          _
        %s276 = sand.u32 %s30, 1
        %s277 = sand.u32 %s30, 1
        %s278 = smul.addr %s277, 8
        %s279 = scalar_lea.vmem [#allocation3], %s278
        %p280 = pneg %p43
        %p281 = pneg %p40
        %p282 = pneg %p64
        %p283 = pneg %p61
        %p284 = pneg %p85
        %p285 = pneg %p82
        %p286 = pneg %p106
        %p287 = pneg %p103
        %p288 = pneg %p127
        %p289 = pneg %p124
        %p290 = pneg %p148
        %p291 = pneg %p145
        %p292 = pneg %p174
        %p293 = pneg %p171
        %s294 = sand.u32 %s161, 1
        %s295 = scalar_lea.sflag [#allocation5], %s294
        %s296 = sand.u32 %s161, 1
        %s297 = scalar_lea.vmem [#allocation4], %s296
        %v298 = vld [vmem:[%s272] sm:$0xf]
        %v299 = vld [vmem:[%s272 + $0x4] sm:$0x1]
        %v300 = vunpack.c.l.bf16 %v298
        %v301 = vunpack.c.l.bf16 %v299
        %v302 = vld [vmem:[%s1] sm:$0xff]
        %v303 = vld [vmem:[%s1 + $0x8] sm:$0xff]
        %v304 = vld [vmem:[%s1 + $0x10] sm:$0xff]
        %v305 = vld [vmem:[%s1 + $0x18] sm:$0xff]
        %vm306 = vcmask 72704
        %v308 = vsel %vm306, %v302, 0
        %v311 = vsel %vm306, %v303, 0
        %v314 = vsel %vm306, %v304, 0
        %v317 = vsel %vm306, %v305, 0
        %vm319 = vcmask 1040384
        %v321 = vsel %vm319, %v301, 0
        %323 = vmatpush.msra.mxu0 0.0
        %324 = vmatpush.msra.mxu0 0.0
        %325 = vmatpush.msra.mxu0 0.0
        %326 = vmatpush.msra.mxu0 0.0
        %327 = vmatpush.msra.mxu0 0.0
        %328 = vmatpush.msra.mxu0 0.0
        %329 = vmatpush.msra.mxu0 0.0
        %330 = vmatpush.msra.mxu0 0.0
        %331 = vmatpush.msra.mxu0 0.0
        %332 = vmatpush.msra.mxu0 0.0
        %333 = vmatpush.msra.mxu0 0.0
        %334 = vmatpush.msra.mxu0 0.0
        %335 = vmatpush.msra.mxu0 0.0
        %336 = vmatpush.msra.mxu0 0.0
        %337 = vmatpush.msra.mxu0 %v321
        %338 = vmatpush.msra.mxu0 %v300
        %339 = vmatmul.f32.gmra.mxu0 %v308
        %v340 = vpop.f32.mrf.mxu0
        %v341 = vadd.f32 0.0, %v340
        %342 = vmatmul.f32.gmra.mxu0 %v311
        %v343 = vpop.f32.mrf.mxu0
        %v344 = vadd.f32 0.0, %v343
        %345 = vmatmul.f32.gmra.mxu0 %v314
        %v346 = vpop.f32.mrf.mxu0
        %v347 = vadd.f32 0.0, %v346
        %348 = vmatmul.f32.gmra.mxu0 %v317
        %v349 = vpop.f32.mrf.mxu0
        %v350 = vadd.f32 0.0, %v349
        %351 = vdwg.mxu0
        %v352 = vmax.f32 %v341, 0.0
        %v353 = vmax.f32 %v344, 0.0
        %v354 = vmax.f32 %v347, 0.0
        %v355 = vmax.f32 %v350, 0.0
        %v356 = vld [vmem:[%s2] sm:$0xff]
        %v357 = vld [vmem:[%s2 + $0x8] sm:$0xff]
        %v358 = vld [vmem:[%s3] sm:$0xff]
        %v359 = vld [vmem:[%s3 + $0x8] sm:$0xff]
        %361 = vset.pattern.permute.xlu0 0
        %362 = vperm.xlu0 %361, %v358
        %v363 = vpop.permute.xlu0 %362
        %366 = vset.pattern.permute.xlu0 0
        %367 = vperm.xlu0 %366, %v359
        %v368 = vpop.permute.xlu0 %367
        %vm370 = vcmask 261120
        %v372 = vsel %vm370, %v356, 0
        %v375 = vsel %vm370, %v357, 0
        %377 = vmatpush.msra.mxu0 0.0
        %378 = vmatpush.msra.mxu0 0.0
        %379 = vmatpush.msra.mxu0 0.0
        %380 = vmatpush.msra.mxu0 0.0
        %381 = vmatpush.msra.mxu0 0.0
        %382 = vmatpush.msra.mxu0 0.0
        %383 = vmatpush.msra.mxu0 0.0
        %384 = vmatpush.msra.mxu0 0.0
        %385 = vmatpush.msra.mxu0 0.0
        %386 = vmatpush.msra.mxu0 0.0
        %387 = vmatpush.msra.mxu0 0.0
        %388 = vmatpush.msra.mxu0 0.0
        %389 = vmatpush.msra.mxu0 %v355
        %390 = vmatpush.msra.mxu0 %v354
        %391 = vmatpush.msra.mxu0 %v353
        %392 = vmatpush.msra.mxu0 %v352
        %393 = vmatmul.f32.gmra.mxu0 %v372
        %v394 = vpop.f32.mrf.mxu0
        %v395 = vadd.f32 %v363, %v394
        %396 = vmatmul.f32.gmra.mxu0 %v375
        %v397 = vpop.f32.mrf.mxu0
        %v398 = vadd.f32 %v368, %v397
        %399 = vdwg.mxu0
        %v400 = vmax.f32 %v395, 0.0
        %v401 = vmax.f32 %v398, 0.0
        %v402 = vld [vmem:[%s4] sm:$0xff]
        %v403 = vld [vmem:[%s4 + $0x8] sm:$0xff]
        %405 = vset.pattern.permute.xlu0 0
        %406 = vperm.xlu0 %405, %v402
        %v407 = vpop.permute.xlu0 %406
        %410 = vset.pattern.permute.xlu0 0
        %411 = vperm.xlu0 %410, %v403
        %v412 = vpop.permute.xlu0 %411
        %v414 = vmul.f32 %v400, %v407
        %v415 = vmul.f32 %v401, %v412
        %v416 = vadd.f32 %v414, %v415
        %v417 = vrot.slane %v416, 4
        %v418 = vadd.f32 %v416, %v417
        %v419 = vrot.slane %v418, 2
        %v420 = vadd.f32 %v418, %v419
        %v421 = vrot.slane %v420, 1
        %v422 = vadd.f32 %v420, %v421
        %v423 = vld [vmem:[#allocation2] sm:$0x1]
        %425 = vset.pattern.permute.xlu0 0
        %426 = vperm.xlu0 %425, %v423
        %v427 = vpop.permute.xlu0 %426
        %v429 = vperm.slane %v427, 0
        %v430 = vadd.f32 %v422, %v429
        %v431 = vmax.f32 %v430, 0.0
        %432 = vst [vmem:[%s297] sm:$0x1] %v431
        %s433 = sand.u32 %s161, 1
        %s434 = scalar_lea.sflag [#allocation5], %s433
        %s435 = sand.u32 %s161, 1
        %s436 = scalar_lea.vmem [#allocation4], %s435
        // Predicated region
        $region86: #{tpu_custom_call.1} parent=80 // pred_check
          %p437 = pneg %p171
        $region87: #{tpu_custom_call.1} parent=80 // pred_check_branch
          %439 = sbr.rel (%p437) target = $region89
        $region88: #{tpu_custom_call.1} parent=80 // pred_region
          %441 = vsyncadd %s434, 0
          %s442 = scalar_lea.hbm %s6, %s22
          %s444 = sshll.u32 %s436, 4
          %s445 = int_to_ptr.vmem [resolvable:$true] %s444
          %s446 = sshll.u32 %s442, 4
          %s447 = int_to_ptr.hbm [resolvable:$true] %s446
          %449 = dma.vmem_to_hbm [thread:$0]  %s445, 16, %s447, %s434
        $region89: #{tpu_custom_call.1} parent=80 // pred_fallthru
          _
      $region81: #{tpu_custom_call.1} parent=5 // pred_fallthru
        _
      %p450 = scmp.le.s32.totalorder 2, %s17
      // Predicated region
      $region90: #{tpu_custom_call.1} parent=5 // pred_check
        %p451 = pneg %p450
      $region91: #{tpu_custom_call.1} parent=5 // pred_check_branch
        %453 = sbr.rel (%p451) target = $region93
      $region92: #{tpu_custom_call.1} parent=5 // pred_region
        %s454 = ssub.s32 %s17, 2
        // Predicated region
        $region94: #{tpu_custom_call.1} parent=92 // pred_check
          %p455 = pneg %p177
        $region95: #{tpu_custom_call.1} parent=92 // pred_check_branch
          %457 = sbr.rel (%p455) target = $region97
        $region96: #{tpu_custom_call.1} parent=92 // pred_region
          %s458 = sand.u32 %s162, 1
          %s459 = scalar_lea.sflag [#allocation5], %s458
          %s460 = sand.u32 %s162, 1
          %s461 = scalar_lea.vmem [#allocation4], %s460
          %463 = dma.done %s459, 16
        $region97: #{tpu_custom_call.1} parent=92 // pred_fallthru
          _
      $region93: #{tpu_custom_call.1} parent=5 // pred_fallthru
        _
    $region6: #{tpu_custom_call.1} parent=1 // loop_footer
      %s21 = sadd.s32 1, %s17
    $region7: #{tpu_custom_call.1} parent=1 // loop_footer_branch
      %16 = sbr.rel target = $region3
    $region8: #{tpu_custom_call.1} parent=1 // loop_exit
      _
    %464 = vsyncpa [#allocation5], 1
    %s465 = scalar_lea.sflag [#allocation5], 1
    %466 = vsyncpa %s465, 1

</llo_original>
